<compile_context>
chip_gen: v7x
topology: tpu7x:2x2x1
jax: 0.10.0
libtpu: 0.0.40
codegen_flags: <defaults>
</compile_context>

<pallas_src>
import functools

import jax
import jax.numpy as jnp
import numpy as np
from jax.experimental import pallas as pl
from jax.experimental.pallas import tpu as pltpu


def _forbidden_seq_kernel(x_ref, o_ref, *, window_size):
    """x_ref/o_ref: (seq_len, 128) f32 — seq along sublanes, batch along lanes."""
    seq_len = o_ref.shape[0]
    ws = window_size

    # State lives in the output block; all flips are applied in place.
    o_ref[...] = x_ref[...]

    # Forbidden patterns as (ws, 1) columns, broadcast over the 128 batch lanes.
    k = jax.lax.broadcasted_iota(jnp.int32, (ws, 1), 0)
    alt = jnp.where(k % 2 == 0, jnp.float32(-1.0), jnp.float32(1.0))   # -1,1,-1,1,...
    pats = (jnp.full((ws, 1), -1.0, jnp.float32),                      # all -1
            alt,                                                       # -1,1,-1,1,...
            -alt,                                                      #  1,-1,1,-1,...
            jnp.full((ws, 1), 1.0, jnp.float32))                       # all +1
    full = jnp.float32(ws)

    # Sequential sliding-window scan: a flip at position j+ws-1 must be visible
    # to the windows starting at j+1 .. j+ws-1, so this loop cannot be parallel.
    # Trip count is tiny and static -> static Python unroll, all slices static.
    for j in range(max(seq_len - ws + 1, 0)):
        w = o_ref[pl.ds(j, ws), :]                         # (ws, 128) current window
        match = None
        for pat in pats:
            hits = jnp.sum(jnp.where(w == pat, jnp.float32(1.0), jnp.float32(0.0)),
                           axis=0, keepdims=True)          # (1, 128)
            m = hits == full
            match = m if match is None else jnp.logical_or(match, m)
        last = w[ws - 1:ws, :]                             # (1, 128)
        o_ref[pl.ds(j + ws - 1, 1), :] = jnp.where(match, -last, last)

    # Final ReLU.
    o_ref[...] = jnp.maximum(o_ref[...], jnp.float32(0.0))


def forbidden_seq_activation(x, window_size=8):
    """x: (batch, seq_len) of +-1 (float). Returns relu(corrected x), float32."""
    B, L = x.shape
    LANES = 128
    n_pad = ((B + LANES - 1) // LANES) * LANES

    # Layout plumbing in the wrapper: scan dim on sublanes, batch on lanes,
    # batch padded to full lanes (zero padding never matches a +-1 pattern).
    xt = jnp.transpose(x.astype(jnp.float32))              # (L, B)
    xt = jnp.pad(xt, ((0, 0), (0, n_pad - B)))             # (L, n_pad)

    out = pl.pallas_call(
        functools.partial(_forbidden_seq_kernel, window_size=window_size),
        out_shape=jax.ShapeDtypeStruct((L, n_pad), jnp.float32),
        grid=(n_pad // LANES,),
        in_specs=[pl.BlockSpec((L, LANES), lambda i: (0, i))],
        out_specs=pl.BlockSpec((L, LANES), lambda i: (0, i)),
        compiler_params=pltpu.CompilerParams(dimension_semantics=("parallel",)),
    )(xt)

    return jnp.transpose(out[:, :B])                       # (B, L)


def _reference_forbidden_seq(x, window_size=8):
    """Pure-Python reimplementation of the torch module (list semantics)."""
    forbidden = [[-1.0] * 8,
                 [-1.0, 1.0] * 4,
                 [1.0, -1.0] * 4,
                 [1.0] * 8]
    seqs = [list(map(float, row)) for row in np.asarray(x).tolist()]
    for i, _ in enumerate(seqs):
        for j in range(len(seqs[i]) - window_size + 1):
            window = seqs[i][j:j + window_size]
            for fs in forbidden:
                if window == fs:
                    seqs[i][j + window_size - 1] = -window[-1]
    out = np.asarray(seqs, dtype=np.float32)
    return np.maximum(out, 0.0)


if __name__ == "__main__":
    B, L, WS = 8, 16, 8

    key = jax.random.PRNGKey(0)
    x = np.asarray(jax.random.bernoulli(key, 0.5, (B, L)), dtype=np.float32) * 2.0 - 1.0
    # Plant rows that hit every forbidden pattern (and exercise the flip cascade).
    x[0, :] = -1.0
    x[1, :] = [(-1.0, 1.0)[i % 2] for i in range(L)]
    x[2, :] = [(1.0, -1.0)[i % 2] for i in range(L)]
    x[3, :] = 1.0

    out = forbidden_seq_activation(jnp.asarray(x), window_size=WS)
    out = jax.block_until_ready(out)

    ref = _reference_forbidden_seq(x, window_size=WS)
    assert out.shape == (B, L), out.shape
    assert np.array_equal(np.asarray(out), ref), (np.asarray(out), ref)
    print("KERNEL_OK")
</pallas_src>

<mosaic_0001>
module attributes {stable_mosaic.version = 11 : i64} {
  func.func @_forbidden_seq_kernel(%arg0: i32, %arg1: memref<16x128xf32, #tpu.memory_space<vmem>>, %arg2: memref<16x128xf32, #tpu.memory_space<vmem>>) attributes {dimension_semantics = [#tpu.dimension_semantics<parallel>], iteration_bounds = array<i64: 1>, scalar_prefetch = 0 : i64, scratch_operands = 0 : i64, tpu.core_type = #tpu.core_type<tc>, window_params = [{transform_indices = @transform_0, window_bounds = array<i64: 16, 128>}, {transform_indices = @transform_1, window_bounds = array<i64: 16, 128>}]} {
    %c0 = arith.constant 0 : index
    %c0_0 = arith.constant 0 : index
    %0 = vector.load %arg1[%c0, %c0_0] : memref<16x128xf32, #tpu.memory_space<vmem>>, vector<16x128xf32>
    %c0_1 = arith.constant 0 : index
    %c0_2 = arith.constant 0 : index
    %1 = vector.load %arg2[%c0_1, %c0_2] : memref<16x128xf32, #tpu.memory_space<vmem>>, vector<16x128xf32>
    tpu.vector_store %arg2[%c0_1, %c0_2], %0 {strides = array<i32>} : memref<16x128xf32, #tpu.memory_space<vmem>>, vector<16x128xf32>,
    %2 = tpu.iota {dimensions = array<i32: 0>} : vector<8x1xi32>
    %c2_i32 = arith.constant 2 : i32
    %c0_i32 = arith.constant 0 : i32
    %3 = arith.cmpi eq, %c2_i32, %c0_i32 : i32
    %c1_i32 = arith.constant 1 : i32
    %4 = arith.select %3, %c1_i32, %c2_i32 : i32
    %5 = vector.broadcast %4 : i32 to vector<8x1xi32>
    %6 = arith.remsi %2, %5 : vector<8x1xi32>
    %c0_i32_3 = arith.constant 0 : i32
    %7 = vector.broadcast %c0_i32_3 : i32 to vector<8x1xi32>
    %8 = arith.cmpi ne, %6, %7 : vector<8x1xi32>
    %c0_i32_4 = arith.constant 0 : i32
    %9 = vector.broadcast %c0_i32_4 : i32 to vector<8x1xi32>
    %10 = arith.cmpi slt, %6, %9 : vector<8x1xi32>
    %c0_i32_5 = arith.constant 0 : i32
    %11 = arith.cmpi slt, %4, %c0_i32_5 : i32
    %12 = vector.broadcast %11 : i1 to vector<8x1xi1>
    %13 = vector.broadcast %12 : vector<8x1xi1> to vector<8x1xi1>
    %14 = arith.xori %10, %13 : vector<8x1xi1>
    %15 = arith.andi %14, %8 : vector<8x1xi1>
    %16 = vector.broadcast %4 : i32 to vector<8x1xi32>
    %17 = arith.addi %6, %16 : vector<8x1xi32>
    %18 = arith.select %15, %17, %6 : vector<8x1xi1>, vector<8x1xi32>
    %c0_i32_6 = arith.constant 0 : i32
    %19 = vector.broadcast %c0_i32_6 : i32 to vector<8x1xi32>
    %20 = arith.cmpi eq, %18, %19 : vector<8x1xi32>
    %cst = arith.constant -1.000000e+00 : f32
    %cst_7 = arith.constant 1.000000e+00 : f32
    %21 = vector.broadcast %cst : f32 to vector<8x1xf32>
    %22 = vector.broadcast %cst_7 : f32 to vector<8x1xf32>
    %23 = arith.select %20, %21, %22 : vector<8x1xi1>, vector<8x1xf32>
    %cst_8 = arith.constant -1.000000e+00 : f32
    %24 = vector.broadcast %cst_8 : f32 to vector<8x1xf32>
    %cst_9 = arith.constant 0.000000e+00 : f32
    %25 = vector.broadcast %cst_9 : f32 to vector<8x1xf32>
    %26 = arith.subf %25, %23 : vector<8x1xf32>
    %cst_10 = arith.constant 1.000000e+00 : f32
    %27 = vector.broadcast %cst_10 : f32 to vector<8x1xf32>
    %c0_11 = arith.constant 0 : index
    %c0_12 = arith.constant 0 : index
    %28 = vector.load %arg2[%c0_11, %c0_12] : memref<16x128xf32, #tpu.memory_space<vmem>>, vector<8x128xf32>
    %29 = vector.broadcast %24 : vector<8x1xf32> to vector<8x128xf32>
    %30 = arith.cmpf oeq, %28, %29 : vector<8x128xf32>
    %cst_13 = arith.constant 1.000000e+00 : f32
    %cst_14 = arith.constant 0.000000e+00 : f32
    %31 = vector.broadcast %cst_13 : f32 to vector<8x128xf32>
    %32 = vector.broadcast %cst_14 : f32 to vector<8x128xf32>
    %33 = arith.select %30, %31, %32 : vector<8x128xi1>, vector<8x128xf32>
    %cst_15 = arith.constant dense<0.000000e+00> : vector<128xf32>
    %34 = vector.multi_reduction <add>, %33, %cst_15 [0] : vector<8x128xf32> to vector<128xf32>
    %35 = vector.shape_cast %34 : vector<128xf32> to vector<1x128xf32>
    %cst_16 = arith.constant 8.000000e+00 : f32
    %36 = vector.broadcast %cst_16 : f32 to vector<1x128xf32>
    %37 = arith.cmpf oeq, %35, %36 : vector<1x128xf32>
    %38 = vector.broadcast %23 : vector<8x1xf32> to vector<8x128xf32>
    %39 = arith.cmpf oeq, %28, %38 : vector<8x128xf32>
    %cst_17 = arith.constant 1.000000e+00 : f32
    %cst_18 = arith.constant 0.000000e+00 : f32
    %40 = vector.broadcast %cst_17 : f32 to vector<8x128xf32>
    %41 = vector.broadcast %cst_18 : f32 to vector<8x128xf32>
    %42 = arith.select %39, %40, %41 : vector<8x128xi1>, vector<8x128xf32>
    %cst_19 = arith.constant dense<0.000000e+00> : vector<128xf32>
    %43 = vector.multi_reduction <add>, %42, %cst_19 [0] : vector<8x128xf32> to vector<128xf32>
    %44 = vector.shape_cast %43 : vector<128xf32> to vector<1x128xf32>
    %cst_20 = arith.constant 8.000000e+00 : f32
    %45 = vector.broadcast %cst_20 : f32 to vector<1x128xf32>
    %46 = arith.cmpf oeq, %44, %45 : vector<1x128xf32>
    %47 = arith.ori %37, %46 : vector<1x128xi1>
    %48 = vector.broadcast %26 : vector<8x1xf32> to vector<8x128xf32>
    %49 = arith.cmpf oeq, %28, %48 : vector<8x128xf32>
    %cst_21 = arith.constant 1.000000e+00 : f32
    %cst_22 = arith.constant 0.000000e+00 : f32
    %50 = vector.broadcast %cst_21 : f32 to vector<8x128xf32>
    %51 = vector.broadcast %cst_22 : f32 to vector<8x128xf32>
    %52 = arith.select %49, %50, %51 : vector<8x128xi1>, vector<8x128xf32>
    %cst_23 = arith.constant dense<0.000000e+00> : vector<128xf32>
    %53 = vector.multi_reduction <add>, %52, %cst_23 [0] : vector<8x128xf32> to vector<128xf32>
    %54 = vector.shape_cast %53 : vector<128xf32> to vector<1x128xf32>
    %cst_24 = arith.constant 8.000000e+00 : f32
    %55 = vector.broadcast %cst_24 : f32 to vector<1x128xf32>
    %56 = arith.cmpf oeq, %54, %55 : vector<1x128xf32>
    %57 = arith.ori %47, %56 : vector<1x128xi1>
    %58 = vector.broadcast %27 : vector<8x1xf32> to vector<8x128xf32>
    %59 = arith.cmpf oeq, %28, %58 : vector<8x128xf32>
    %cst_25 = arith.constant 1.000000e+00 : f32
    %cst_26 = arith.constant 0.000000e+00 : f32
    %60 = vector.broadcast %cst_25 : f32 to vector<8x128xf32>
    %61 = vector.broadcast %cst_26 : f32 to vector<8x128xf32>
    %62 = arith.select %59, %60, %61 : vector<8x128xi1>, vector<8x128xf32>
    %cst_27 = arith.constant dense<0.000000e+00> : vector<128xf32>
    %63 = vector.multi_reduction <add>, %62, %cst_27 [0] : vector<8x128xf32> to vector<128xf32>
    %64 = vector.shape_cast %63 : vector<128xf32> to vector<1x128xf32>
    %cst_28 = arith.constant 8.000000e+00 : f32
    %65 = vector.broadcast %cst_28 : f32 to vector<1x128xf32>
    %66 = arith.cmpf oeq, %64, %65 : vector<1x128xf32>
    %67 = arith.ori %57, %66 : vector<1x128xi1>
    %68 = vector.extract_strided_slice %28 {offsets = [7, 0], sizes = [1, 128], strides = [1, 1]} : vector<8x128xf32> to vector<1x128xf32>
    %cst_29 = arith.constant 0.000000e+00 : f32
    %69 = vector.broadcast %cst_29 : f32 to vector<1x128xf32>
    %70 = arith.subf %69, %68 : vector<1x128xf32>
    %71 = arith.select %67, %70, %68 : vector<1x128xi1>, vector<1x128xf32>
    %c7 = arith.constant 7 : index
    %c0_30 = arith.constant 0 : index
    %72 = vector.load %arg2[%c7, %c0_30] : memref<16x128xf32, #tpu.memory_space<vmem>>, vector<1x128xf32>
    tpu.vector_store %arg2[%c7, %c0_30], %71 {strides = array<i32>} : memref<16x128xf32, #tpu.memory_space<vmem>>, vector<1x128xf32>,
    %c1 = arith.constant 1 : index
    %c0_31 = arith.constant 0 : index
    %73 = vector.load %arg2[%c1, %c0_31] : memref<16x128xf32, #tpu.memory_space<vmem>>, vector<8x128xf32>
    %74 = vector.broadcast %24 : vector<8x1xf32> to vector<8x128xf32>
    %75 = arith.cmpf oeq, %73, %74 : vector<8x128xf32>
    %cst_32 = arith.constant 1.000000e+00 : f32
    %cst_33 = arith.constant 0.000000e+00 : f32
    %76 = vector.broadcast %cst_32 : f32 to vector<8x128xf32>
    %77 = vector.broadcast %cst_33 : f32 to vector<8x128xf32>
    %78 = arith.select %75, %76, %77 : vector<8x128xi1>, vector<8x128xf32>
    %cst_34 = arith.constant dense<0.000000e+00> : vector<128xf32>
    %79 = vector.multi_reduction <add>, %78, %cst_34 [0] : vector<8x128xf32> to vector<128xf32>
    %80 = vector.shape_cast %79 : vector<128xf32> to vector<1x128xf32>
    %cst_35 = arith.constant 8.000000e+00 : f32
    %81 = vector.broadcast %cst_35 : f32 to vector<1x128xf32>
    %82 = arith.cmpf oeq, %80, %81 : vector<1x128xf32>
    %83 = vector.broadcast %23 : vector<8x1xf32> to vector<8x128xf32>
    %84 = arith.cmpf oeq, %73, %83 : vector<8x128xf32>
    %cst_36 = arith.constant 1.000000e+00 : f32
    %cst_37 = arith.constant 0.000000e+00 : f32
    %85 = vector.broadcast %cst_36 : f32 to vector<8x128xf32>
    %86 = vector.broadcast %cst_37 : f32 to vector<8x128xf32>
    %87 = arith.select %84, %85, %86 : vector<8x128xi1>, vector<8x128xf32>
    %cst_38 = arith.constant dense<0.000000e+00> : vector<128xf32>
    %88 = vector.multi_reduction <add>, %87, %cst_38 [0] : vector<8x128xf32> to vector<128xf32>
    %89 = vector.shape_cast %88 : vector<128xf32> to vector<1x128xf32>
    %cst_39 = arith.constant 8.000000e+00 : f32
    %90 = vector.broadcast %cst_39 : f32 to vector<1x128xf32>
    %91 = arith.cmpf oeq, %89, %90 : vector<1x128xf32>
    %92 = arith.ori %82, %91 : vector<1x128xi1>
    %93 = vector.broadcast %26 : vector<8x1xf32> to vector<8x128xf32>
    %94 = arith.cmpf oeq, %73, %93 : vector<8x128xf32>
    %cst_40 = arith.constant 1.000000e+00 : f32
    %cst_41 = arith.constant 0.000000e+00 : f32
    %95 = vector.broadcast %cst_40 : f32 to vector<8x128xf32>
    %96 = vector.broadcast %cst_41 : f32 to vector<8x128xf32>
    %97 = arith.select %94, %95, %96 : vector<8x128xi1>, vector<8x128xf32>
    %cst_42 = arith.constant dense<0.000000e+00> : vector<128xf32>
    %98 = vector.multi_reduction <add>, %97, %cst_42 [0] : vector<8x128xf32> to vector<128xf32>
    %99 = vector.shape_cast %98 : vector<128xf32> to vector<1x128xf32>
    %cst_43 = arith.constant 8.000000e+00 : f32
    %100 = vector.broadcast %cst_43 : f32 to vector<1x128xf32>
    %101 = arith.cmpf oeq, %99, %100 : vector<1x128xf32>
    %102 = arith.ori %92, %101 : vector<1x128xi1>
    %103 = vector.broadcast %27 : vector<8x1xf32> to vector<8x128xf32>
    %104 = arith.cmpf oeq, %73, %103 : vector<8x128xf32>
    %cst_44 = arith.constant 1.000000e+00 : f32
    %cst_45 = arith.constant 0.000000e+00 : f32
    %105 = vector.broadcast %cst_44 : f32 to vector<8x128xf32>
    %106 = vector.broadcast %cst_45 : f32 to vector<8x128xf32>
    %107 = arith.select %104, %105, %106 : vector<8x128xi1>, vector<8x128xf32>
    %cst_46 = arith.constant dense<0.000000e+00> : vector<128xf32>
    %108 = vector.multi_reduction <add>, %107, %cst_46 [0] : vector<8x128xf32> to vector<128xf32>
    %109 = vector.shape_cast %108 : vector<128xf32> to vector<1x128xf32>
    %cst_47 = arith.constant 8.000000e+00 : f32
    %110 = vector.broadcast %cst_47 : f32 to vector<1x128xf32>
    %111 = arith.cmpf oeq, %109, %110 : vector<1x128xf32>
    %112 = arith.ori %102, %111 : vector<1x128xi1>
    %113 = vector.extract_strided_slice %73 {offsets = [7, 0], sizes = [1, 128], strides = [1, 1]} : vector<8x128xf32> to vector<1x128xf32>
    %cst_48 = arith.constant 0.000000e+00 : f32
    %114 = vector.broadcast %cst_48 : f32 to vector<1x128xf32>
    %115 = arith.subf %114, %113 : vector<1x128xf32>
    %116 = arith.select %112, %115, %113 : vector<1x128xi1>, vector<1x128xf32>
    %c8 = arith.constant 8 : index
    %c0_49 = arith.constant 0 : index
    %117 = vector.load %arg2[%c8, %c0_49] : memref<16x128xf32, #tpu.memory_space<vmem>>, vector<1x128xf32>
    tpu.vector_store %arg2[%c8, %c0_49], %116 {strides = array<i32>} : memref<16x128xf32, #tpu.memory_space<vmem>>, vector<1x128xf32>,
    %c2 = arith.constant 2 : index
    %c0_50 = arith.constant 0 : index
    %118 = vector.load %arg2[%c2, %c0_50] : memref<16x128xf32, #tpu.memory_space<vmem>>, vector<8x128xf32>
    %119 = vector.broadcast %24 : vector<8x1xf32> to vector<8x128xf32>
    %120 = arith.cmpf oeq, %118, %119 : vector<8x128xf32>
    %cst_51 = arith.constant 1.000000e+00 : f32
    %cst_52 = arith.constant 0.000000e+00 : f32
    %121 = vector.broadcast %cst_51 : f32 to vector<8x128xf32>
    %122 = vector.broadcast %cst_52 : f32 to vector<8x128xf32>
    %123 = arith.select %120, %121, %122 : vector<8x128xi1>, vector<8x128xf32>
    %cst_53 = arith.constant dense<0.000000e+00> : vector<128xf32>
    %124 = vector.multi_reduction <add>, %123, %cst_53 [0] : vector<8x128xf32> to vector<128xf32>
    %125 = vector.shape_cast %124 : vector<128xf32> to vector<1x128xf32>
    %cst_54 = arith.constant 8.000000e+00 : f32
    %126 = vector.broadcast %cst_54 : f32 to vector<1x128xf32>
    %127 = arith.cmpf oeq, %125, %126 : vector<1x128xf32>
    %128 = vector.broadcast %23 : vector<8x1xf32> to vector<8x128xf32>
    %129 = arith.cmpf oeq, %118, %128 : vector<8x128xf32>
    %cst_55 = arith.constant 1.000000e+00 : f32
    %cst_56 = arith.constant 0.000000e+00 : f32
    %130 = vector.broadcast %cst_55 : f32 to vector<8x128xf32>
    %131 = vector.broadcast %cst_56 : f32 to vector<8x128xf32>
    %132 = arith.select %129, %130, %131 : vector<8x128xi1>, vector<8x128xf32>
    %cst_57 = arith.constant dense<0.000000e+00> : vector<128xf32>
    %133 = vector.multi_reduction <add>, %132, %cst_57 [0] : vector<8x128xf32> to vector<128xf32>
    %134 = vector.shape_cast %133 : vector<128xf32> to vector<1x128xf32>
    %cst_58 = arith.constant 8.000000e+00 : f32
    %135 = vector.broadcast %cst_58 : f32 to vector<1x128xf32>
    %136 = arith.cmpf oeq, %134, %135 : vector<1x128xf32>
    %137 = arith.ori %127, %136 : vector<1x128xi1>
    %138 = vector.broadcast %26 : vector<8x1xf32> to vector<8x128xf32>
    %139 = arith.cmpf oeq, %118, %138 : vector<8x128xf32>
    %cst_59 = arith.constant 1.000000e+00 : f32
    %cst_60 = arith.constant 0.000000e+00 : f32
    %140 = vector.broadcast %cst_59 : f32 to vector<8x128xf32>
    %141 = vector.broadcast %cst_60 : f32 to vector<8x128xf32>
    %142 = arith.select %139, %140, %141 : vector<8x128xi1>, vector<8x128xf32>
    %cst_61 = arith.constant dense<0.000000e+00> : vector<128xf32>
    %143 = vector.multi_reduction <add>, %142, %cst_61 [0] : vector<8x128xf32> to vector<128xf32>
    %144 = vector.shape_cast %143 : vector<128xf32> to vector<1x128xf32>
    %cst_62 = arith.constant 8.000000e+00 : f32
    %145 = vector.broadcast %cst_62 : f32 to vector<1x128xf32>
    %146 = arith.cmpf oeq, %144, %145 : vector<1x128xf32>
    %147 = arith.ori %137, %146 : vector<1x128xi1>
    %148 = vector.broadcast %27 : vector<8x1xf32> to vector<8x128xf32>
    %149 = arith.cmpf oeq, %118, %148 : vector<8x128xf32>
    %cst_63 = arith.constant 1.000000e+00 : f32
    %cst_64 = arith.constant 0.000000e+00 : f32
    %150 = vector.broadcast %cst_63 : f32 to vector<8x128xf32>
    %151 = vector.broadcast %cst_64 : f32 to vector<8x128xf32>
    %152 = arith.select %149, %150, %151 : vector<8x128xi1>, vector<8x128xf32>
    %cst_65 = arith.constant dense<0.000000e+00> : vector<128xf32>
    %153 = vector.multi_reduction <add>, %152, %cst_65 [0] : vector<8x128xf32> to vector<128xf32>
    %154 = vector.shape_cast %153 : vector<128xf32> to vector<1x128xf32>
    %cst_66 = arith.constant 8.000000e+00 : f32
    %155 = vector.broadcast %cst_66 : f32 to vector<1x128xf32>
    %156 = arith.cmpf oeq, %154, %155 : vector<1x128xf32>
    %157 = arith.ori %147, %156 : vector<1x128xi1>
    %158 = vector.extract_strided_slice %118 {offsets = [7, 0], sizes = [1, 128], strides = [1, 1]} : vector<8x128xf32> to vector<1x128xf32>
    %cst_67 = arith.constant 0.000000e+00 : f32
    %159 = vector.broadcast %cst_67 : f32 to vector<1x128xf32>
    %160 = arith.subf %159, %158 : vector<1x128xf32>
    %161 = arith.select %157, %160, %158 : vector<1x128xi1>, vector<1x128xf32>
    %c9 = arith.constant 9 : index
    %c0_68 = arith.constant 0 : index
    %162 = vector.load %arg2[%c9, %c0_68] : memref<16x128xf32, #tpu.memory_space<vmem>>, vector<1x128xf32>
    tpu.vector_store %arg2[%c9, %c0_68], %161 {strides = array<i32>} : memref<16x128xf32, #tpu.memory_space<vmem>>, vector<1x128xf32>,
    %c3 = arith.constant 3 : index
    %c0_69 = arith.constant 0 : index
    %163 = vector.load %arg2[%c3, %c0_69] : memref<16x128xf32, #tpu.memory_space<vmem>>, vector<8x128xf32>
    %164 = vector.broadcast %24 : vector<8x1xf32> to vector<8x128xf32>
    %165 = arith.cmpf oeq, %163, %164 : vector<8x128xf32>
    %cst_70 = arith.constant 1.000000e+00 : f32
    %cst_71 = arith.constant 0.000000e+00 : f32
    %166 = vector.broadcast %cst_70 : f32 to vector<8x128xf32>
    %167 = vector.broadcast %cst_71 : f32 to vector<8x128xf32>
    %168 = arith.select %165, %166, %167 : vector<8x128xi1>, vector<8x128xf32>
    %cst_72 = arith.constant dense<0.000000e+00> : vector<128xf32>
    %169 = vector.multi_reduction <add>, %168, %cst_72 [0] : vector<8x128xf32> to vector<128xf32>
    %170 = vector.shape_cast %169 : vector<128xf32> to vector<1x128xf32>
    %cst_73 = arith.constant 8.000000e+00 : f32
    %171 = vector.broadcast %cst_73 : f32 to vector<1x128xf32>
    %172 = arith.cmpf oeq, %170, %171 : vector<1x128xf32>
    %173 = vector.broadcast %23 : vector<8x1xf32> to vector<8x128xf32>
    %174 = arith.cmpf oeq, %163, %173 : vector<8x128xf32>
    %cst_74 = arith.constant 1.000000e+00 : f32
    %cst_75 = arith.constant 0.000000e+00 : f32
    %175 = vector.broadcast %cst_74 : f32 to vector<8x128xf32>
    %176 = vector.broadcast %cst_75 : f32 to vector<8x128xf32>
    %177 = arith.select %174, %175, %176 : vector<8x128xi1>, vector<8x128xf32>
    %cst_76 = arith.constant dense<0.000000e+00> : vector<128xf32>
    %178 = vector.multi_reduction <add>, %177, %cst_76 [0] : vector<8x128xf32> to vector<128xf32>
    %179 = vector.shape_cast %178 : vector<128xf32> to vector<1x128xf32>
    %cst_77 = arith.constant 8.000000e+00 : f32
    %180 = vector.broadcast %cst_77 : f32 to vector<1x128xf32>
    %181 = arith.cmpf oeq, %179, %180 : vector<1x128xf32>
    %182 = arith.ori %172, %181 : vector<1x128xi1>
    %183 = vector.broadcast %26 : vector<8x1xf32> to vector<8x128xf32>
    %184 = arith.cmpf oeq, %163, %183 : vector<8x128xf32>
    %cst_78 = arith.constant 1.000000e+00 : f32
    %cst_79 = arith.constant 0.000000e+00 : f32
    %185 = vector.broadcast %cst_78 : f32 to vector<8x128xf32>
    %186 = vector.broadcast %cst_79 : f32 to vector<8x128xf32>
    %187 = arith.select %184, %185, %186 : vector<8x128xi1>, vector<8x128xf32>
    %cst_80 = arith.constant dense<0.000000e+00> : vector<128xf32>
    %188 = vector.multi_reduction <add>, %187, %cst_80 [0] : vector<8x128xf32> to vector<128xf32>
    %189 = vector.shape_cast %188 : vector<128xf32> to vector<1x128xf32>
    %cst_81 = arith.constant 8.000000e+00 : f32
    %190 = vector.broadcast %cst_81 : f32 to vector<1x128xf32>
    %191 = arith.cmpf oeq, %189, %190 : vector<1x128xf32>
    %192 = arith.ori %182, %191 : vector<1x128xi1>
    %193 = vector.broadcast %27 : vector<8x1xf32> to vector<8x128xf32>
    %194 = arith.cmpf oeq, %163, %193 : vector<8x128xf32>
    %cst_82 = arith.constant 1.000000e+00 : f32
    %cst_83 = arith.constant 0.000000e+00 : f32
    %195 = vector.broadcast %cst_82 : f32 to vector<8x128xf32>
    %196 = vector.broadcast %cst_83 : f32 to vector<8x128xf32>
    %197 = arith.select %194, %195, %196 : vector<8x128xi1>, vector<8x128xf32>
    %cst_84 = arith.constant dense<0.000000e+00> : vector<128xf32>
    %198 = vector.multi_reduction <add>, %197, %cst_84 [0] : vector<8x128xf32> to vector<128xf32>
    %199 = vector.shape_cast %198 : vector<128xf32> to vector<1x128xf32>
    %cst_85 = arith.constant 8.000000e+00 : f32
    %200 = vector.broadcast %cst_85 : f32 to vector<1x128xf32>
    %201 = arith.cmpf oeq, %199, %200 : vector<1x128xf32>
    %202 = arith.ori %192, %201 : vector<1x128xi1>
    %203 = vector.extract_strided_slice %163 {offsets = [7, 0], sizes = [1, 128], strides = [1, 1]} : vector<8x128xf32> to vector<1x128xf32>
    %cst_86 = arith.constant 0.000000e+00 : f32
    %204 = vector.broadcast %cst_86 : f32 to vector<1x128xf32>
    %205 = arith.subf %204, %203 : vector<1x128xf32>
    %206 = arith.select %202, %205, %203 : vector<1x128xi1>, vector<1x128xf32>
    %c10 = arith.constant 10 : index
    %c0_87 = arith.constant 0 : index
    %207 = vector.load %arg2[%c10, %c0_87] : memref<16x128xf32, #tpu.memory_space<vmem>>, vector<1x128xf32>
    tpu.vector_store %arg2[%c10, %c0_87], %206 {strides = array<i32>} : memref<16x128xf32, #tpu.memory_space<vmem>>, vector<1x128xf32>,
    %c4 = arith.constant 4 : index
    %c0_88 = arith.constant 0 : index
    %208 = vector.load %arg2[%c4, %c0_88] : memref<16x128xf32, #tpu.memory_space<vmem>>, vector<8x128xf32>
    %209 = vector.broadcast %24 : vector<8x1xf32> to vector<8x128xf32>
    %210 = arith.cmpf oeq, %208, %209 : vector<8x128xf32>
    %cst_89 = arith.constant 1.000000e+00 : f32
    %cst_90 = arith.constant 0.000000e+00 : f32
    %211 = vector.broadcast %cst_89 : f32 to vector<8x128xf32>
    %212 = vector.broadcast %cst_90 : f32 to vector<8x128xf32>
    %213 = arith.select %210, %211, %212 : vector<8x128xi1>, vector<8x128xf32>
    %cst_91 = arith.constant dense<0.000000e+00> : vector<128xf32>
    %214 = vector.multi_reduction <add>, %213, %cst_91 [0] : vector<8x128xf32> to vector<128xf32>
    %215 = vector.shape_cast %214 : vector<128xf32> to vector<1x128xf32>
    %cst_92 = arith.constant 8.000000e+00 : f32
    %216 = vector.broadcast %cst_92 : f32 to vector<1x128xf32>
    %217 = arith.cmpf oeq, %215, %216 : vector<1x128xf32>
    %218 = vector.broadcast %23 : vector<8x1xf32> to vector<8x128xf32>
    %219 = arith.cmpf oeq, %208, %218 : vector<8x128xf32>
    %cst_93 = arith.constant 1.000000e+00 : f32
    %cst_94 = arith.constant 0.000000e+00 : f32
    %220 = vector.broadcast %cst_93 : f32 to vector<8x128xf32>
    %221 = vector.broadcast %cst_94 : f32 to vector<8x128xf32>
    %222 = arith.select %219, %220, %221 : vector<8x128xi1>, vector<8x128xf32>
    %cst_95 = arith.constant dense<0.000000e+00> : vector<128xf32>
    %223 = vector.multi_reduction <add>, %222, %cst_95 [0] : vector<8x128xf32> to vector<128xf32>
    %224 = vector.shape_cast %223 : vector<128xf32> to vector<1x128xf32>
    %cst_96 = arith.constant 8.000000e+00 : f32
    %225 = vector.broadcast %cst_96 : f32 to vector<1x128xf32>
    %226 = arith.cmpf oeq, %224, %225 : vector<1x128xf32>
    %227 = arith.ori %217, %226 : vector<1x128xi1>
    %228 = vector.broadcast %26 : vector<8x1xf32> to vector<8x128xf32>
    %229 = arith.cmpf oeq, %208, %228 : vector<8x128xf32>
    %cst_97 = arith.constant 1.000000e+00 : f32
    %cst_98 = arith.constant 0.000000e+00 : f32
    %230 = vector.broadcast %cst_97 : f32 to vector<8x128xf32>
    %231 = vector.broadcast %cst_98 : f32 to vector<8x128xf32>
    %232 = arith.select %229, %230, %231 : vector<8x128xi1>, vector<8x128xf32>
    %cst_99 = arith.constant dense<0.000000e+00> : vector<128xf32>
    %233 = vector.multi_reduction <add>, %232, %cst_99 [0] : vector<8x128xf32> to vector<128xf32>
    %234 = vector.shape_cast %233 : vector<128xf32> to vector<1x128xf32>
    %cst_100 = arith.constant 8.000000e+00 : f32
    %235 = vector.broadcast %cst_100 : f32 to vector<1x128xf32>
    %236 = arith.cmpf oeq, %234, %235 : vector<1x128xf32>
    %237 = arith.ori %227, %236 : vector<1x128xi1>
    %238 = vector.broadcast %27 : vector<8x1xf32> to vector<8x128xf32>
    %239 = arith.cmpf oeq, %208, %238 : vector<8x128xf32>
    %cst_101 = arith.constant 1.000000e+00 : f32
    %cst_102 = arith.constant 0.000000e+00 : f32
    %240 = vector.broadcast %cst_101 : f32 to vector<8x128xf32>
    %241 = vector.broadcast %cst_102 : f32 to vector<8x128xf32>
    %242 = arith.select %239, %240, %241 : vector<8x128xi1>, vector<8x128xf32>
    %cst_103 = arith.constant dense<0.000000e+00> : vector<128xf32>
    %243 = vector.multi_reduction <add>, %242, %cst_103 [0] : vector<8x128xf32> to vector<128xf32>
    %244 = vector.shape_cast %243 : vector<128xf32> to vector<1x128xf32>
    %cst_104 = arith.constant 8.000000e+00 : f32
    %245 = vector.broadcast %cst_104 : f32 to vector<1x128xf32>
    %246 = arith.cmpf oeq, %244, %245 : vector<1x128xf32>
    %247 = arith.ori %237, %246 : vector<1x128xi1>
    %248 = vector.extract_strided_slice %208 {offsets = [7, 0], sizes = [1, 128], strides = [1, 1]} : vector<8x128xf32> to vector<1x128xf32>
    %cst_105 = arith.constant 0.000000e+00 : f32
    %249 = vector.broadcast %cst_105 : f32 to vector<1x128xf32>
    %250 = arith.subf %249, %248 : vector<1x128xf32>
    %251 = arith.select %247, %250, %248 : vector<1x128xi1>, vector<1x128xf32>
    %c11 = arith.constant 11 : index
    %c0_106 = arith.constant 0 : index
    %252 = vector.load %arg2[%c11, %c0_106] : memref<16x128xf32, #tpu.memory_space<vmem>>, vector<1x128xf32>
    tpu.vector_store %arg2[%c11, %c0_106], %251 {strides = array<i32>} : memref<16x128xf32, #tpu.memory_space<vmem>>, vector<1x128xf32>,
    %c5 = arith.constant 5 : index
    %c0_107 = arith.constant 0 : index
    %253 = vector.load %arg2[%c5, %c0_107] : memref<16x128xf32, #tpu.memory_space<vmem>>, vector<8x128xf32>
    %254 = vector.broadcast %24 : vector<8x1xf32> to vector<8x128xf32>
    %255 = arith.cmpf oeq, %253, %254 : vector<8x128xf32>
    %cst_108 = arith.constant 1.000000e+00 : f32
    %cst_109 = arith.constant 0.000000e+00 : f32
    %256 = vector.broadcast %cst_108 : f32 to vector<8x128xf32>
    %257 = vector.broadcast %cst_109 : f32 to vector<8x128xf32>
    %258 = arith.select %255, %256, %257 : vector<8x128xi1>, vector<8x128xf32>
    %cst_110 = arith.constant dense<0.000000e+00> : vector<128xf32>
    %259 = vector.multi_reduction <add>, %258, %cst_110 [0] : vector<8x128xf32> to vector<128xf32>
    %260 = vector.shape_cast %259 : vector<128xf32> to vector<1x128xf32>
    %cst_111 = arith.constant 8.000000e+00 : f32
    %261 = vector.broadcast %cst_111 : f32 to vector<1x128xf32>
    %262 = arith.cmpf oeq, %260, %261 : vector<1x128xf32>
    %263 = vector.broadcast %23 : vector<8x1xf32> to vector<8x128xf32>
    %264 = arith.cmpf oeq, %253, %263 : vector<8x128xf32>
    %cst_112 = arith.constant 1.000000e+00 : f32
    %cst_113 = arith.constant 0.000000e+00 : f32
    %265 = vector.broadcast %cst_112 : f32 to vector<8x128xf32>
    %266 = vector.broadcast %cst_113 : f32 to vector<8x128xf32>
    %267 = arith.select %264, %265, %266 : vector<8x128xi1>, vector<8x128xf32>
    %cst_114 = arith.constant dense<0.000000e+00> : vector<128xf32>
    %268 = vector.multi_reduction <add>, %267, %cst_114 [0] : vector<8x128xf32> to vector<128xf32>
    %269 = vector.shape_cast %268 : vector<128xf32> to vector<1x128xf32>
    %cst_115 = arith.constant 8.000000e+00 : f32
    %270 = vector.broadcast %cst_115 : f32 to vector<1x128xf32>
    %271 = arith.cmpf oeq, %269, %270 : vector<1x128xf32>
    %272 = arith.ori %262, %271 : vector<1x128xi1>
    %273 = vector.broadcast %26 : vector<8x1xf32> to vector<8x128xf32>
    %274 = arith.cmpf oeq, %253, %273 : vector<8x128xf32>
    %cst_116 = arith.constant 1.000000e+00 : f32
    %cst_117 = arith.constant 0.000000e+00 : f32
    %275 = vector.broadcast %cst_116 : f32 to vector<8x128xf32>
    %276 = vector.broadcast %cst_117 : f32 to vector<8x128xf32>
    %277 = arith.select %274, %275, %276 : vector<8x128xi1>, vector<8x128xf32>
    %cst_118 = arith.constant dense<0.000000e+00> : vector<128xf32>
    %278 = vector.multi_reduction <add>, %277, %cst_118 [0] : vector<8x128xf32> to vector<128xf32>
    %279 = vector.shape_cast %278 : vector<128xf32> to vector<1x128xf32>
    %cst_119 = arith.constant 8.000000e+00 : f32
    %280 = vector.broadcast %cst_119 : f32 to vector<1x128xf32>
    %281 = arith.cmpf oeq, %279, %280 : vector<1x128xf32>
    %282 = arith.ori %272, %281 : vector<1x128xi1>
    %283 = vector.broadcast %27 : vector<8x1xf32> to vector<8x128xf32>
    %284 = arith.cmpf oeq, %253, %283 : vector<8x128xf32>
    %cst_120 = arith.constant 1.000000e+00 : f32
    %cst_121 = arith.constant 0.000000e+00 : f32
    %285 = vector.broadcast %cst_120 : f32 to vector<8x128xf32>
    %286 = vector.broadcast %cst_121 : f32 to vector<8x128xf32>
    %287 = arith.select %284, %285, %286 : vector<8x128xi1>, vector<8x128xf32>
    %cst_122 = arith.constant dense<0.000000e+00> : vector<128xf32>
    %288 = vector.multi_reduction <add>, %287, %cst_122 [0] : vector<8x128xf32> to vector<128xf32>
    %289 = vector.shape_cast %288 : vector<128xf32> to vector<1x128xf32>
    %cst_123 = arith.constant 8.000000e+00 : f32
    %290 = vector.broadcast %cst_123 : f32 to vector<1x128xf32>
    %291 = arith.cmpf oeq, %289, %290 : vector<1x128xf32>
    %292 = arith.ori %282, %291 : vector<1x128xi1>
    %293 = vector.extract_strided_slice %253 {offsets = [7, 0], sizes = [1, 128], strides = [1, 1]} : vector<8x128xf32> to vector<1x128xf32>
    %cst_124 = arith.constant 0.000000e+00 : f32
    %294 = vector.broadcast %cst_124 : f32 to vector<1x128xf32>
    %295 = arith.subf %294, %293 : vector<1x128xf32>
    %296 = arith.select %292, %295, %293 : vector<1x128xi1>, vector<1x128xf32>
    %c12 = arith.constant 12 : index
    %c0_125 = arith.constant 0 : index
    %297 = vector.load %arg2[%c12, %c0_125] : memref<16x128xf32, #tpu.memory_space<vmem>>, vector<1x128xf32>
    tpu.vector_store %arg2[%c12, %c0_125], %296 {strides = array<i32>} : memref<16x128xf32, #tpu.memory_space<vmem>>, vector<1x128xf32>,
    %c6 = arith.constant 6 : index
    %c0_126 = arith.constant 0 : index
    %298 = vector.load %arg2[%c6, %c0_126] : memref<16x128xf32, #tpu.memory_space<vmem>>, vector<8x128xf32>
    %299 = vector.broadcast %24 : vector<8x1xf32> to vector<8x128xf32>
    %300 = arith.cmpf oeq, %298, %299 : vector<8x128xf32>
    %cst_127 = arith.constant 1.000000e+00 : f32
    %cst_128 = arith.constant 0.000000e+00 : f32
    %301 = vector.broadcast %cst_127 : f32 to vector<8x128xf32>
    %302 = vector.broadcast %cst_128 : f32 to vector<8x128xf32>
    %303 = arith.select %300, %301, %302 : vector<8x128xi1>, vector<8x128xf32>
    %cst_129 = arith.constant dense<0.000000e+00> : vector<128xf32>
    %304 = vector.multi_reduction <add>, %303, %cst_129 [0] : vector<8x128xf32> to vector<128xf32>
    %305 = vector.shape_cast %304 : vector<128xf32> to vector<1x128xf32>
    %cst_130 = arith.constant 8.000000e+00 : f32
    %306 = vector.broadcast %cst_130 : f32 to vector<1x128xf32>
    %307 = arith.cmpf oeq, %305, %306 : vector<1x128xf32>
    %308 = vector.broadcast %23 : vector<8x1xf32> to vector<8x128xf32>
    %309 = arith.cmpf oeq, %298, %308 : vector<8x128xf32>
    %cst_131 = arith.constant 1.000000e+00 : f32
    %cst_132 = arith.constant 0.000000e+00 : f32
    %310 = vector.broadcast %cst_131 : f32 to vector<8x128xf32>
    %311 = vector.broadcast %cst_132 : f32 to vector<8x128xf32>
    %312 = arith.select %309, %310, %311 : vector<8x128xi1>, vector<8x128xf32>
    %cst_133 = arith.constant dense<0.000000e+00> : vector<128xf32>
    %313 = vector.multi_reduction <add>, %312, %cst_133 [0] : vector<8x128xf32> to vector<128xf32>
    %314 = vector.shape_cast %313 : vector<128xf32> to vector<1x128xf32>
    %cst_134 = arith.constant 8.000000e+00 : f32
    %315 = vector.broadcast %cst_134 : f32 to vector<1x128xf32>
    %316 = arith.cmpf oeq, %314, %315 : vector<1x128xf32>
    %317 = arith.ori %307, %316 : vector<1x128xi1>
    %318 = vector.broadcast %26 : vector<8x1xf32> to vector<8x128xf32>
    %319 = arith.cmpf oeq, %298, %318 : vector<8x128xf32>
    %cst_135 = arith.constant 1.000000e+00 : f32
    %cst_136 = arith.constant 0.000000e+00 : f32
    %320 = vector.broadcast %cst_135 : f32 to vector<8x128xf32>
    %321 = vector.broadcast %cst_136 : f32 to vector<8x128xf32>
    %322 = arith.select %319, %320, %321 : vector<8x128xi1>, vector<8x128xf32>
    %cst_137 = arith.constant dense<0.000000e+00> : vector<128xf32>
    %323 = vector.multi_reduction <add>, %322, %cst_137 [0] : vector<8x128xf32> to vector<128xf32>
    %324 = vector.shape_cast %323 : vector<128xf32> to vector<1x128xf32>
    %cst_138 = arith.constant 8.000000e+00 : f32
    %325 = vector.broadcast %cst_138 : f32 to vector<1x128xf32>
    %326 = arith.cmpf oeq, %324, %325 : vector<1x128xf32>
    %327 = arith.ori %317, %326 : vector<1x128xi1>
    %328 = vector.broadcast %27 : vector<8x1xf32> to vector<8x128xf32>
    %329 = arith.cmpf oeq, %298, %328 : vector<8x128xf32>
    %cst_139 = arith.constant 1.000000e+00 : f32
    %cst_140 = arith.constant 0.000000e+00 : f32
    %330 = vector.broadcast %cst_139 : f32 to vector<8x128xf32>
    %331 = vector.broadcast %cst_140 : f32 to vector<8x128xf32>
    %332 = arith.select %329, %330, %331 : vector<8x128xi1>, vector<8x128xf32>
    %cst_141 = arith.constant dense<0.000000e+00> : vector<128xf32>
    %333 = vector.multi_reduction <add>, %332, %cst_141 [0] : vector<8x128xf32> to vector<128xf32>
    %334 = vector.shape_cast %333 : vector<128xf32> to vector<1x128xf32>
    %cst_142 = arith.constant 8.000000e+00 : f32
    %335 = vector.broadcast %cst_142 : f32 to vector<1x128xf32>
    %336 = arith.cmpf oeq, %334, %335 : vector<1x128xf32>
    %337 = arith.ori %327, %336 : vector<1x128xi1>
    %338 = vector.extract_strided_slice %298 {offsets = [7, 0], sizes = [1, 128], strides = [1, 1]} : vector<8x128xf32> to vector<1x128xf32>
    %cst_143 = arith.constant 0.000000e+00 : f32
    %339 = vector.broadcast %cst_143 : f32 to vector<1x128xf32>
    %340 = arith.subf %339, %338 : vector<1x128xf32>
    %341 = arith.select %337, %340, %338 : vector<1x128xi1>, vector<1x128xf32>
    %c13 = arith.constant 13 : index
    %c0_144 = arith.constant 0 : index
    %342 = vector.load %arg2[%c13, %c0_144] : memref<16x128xf32, #tpu.memory_space<vmem>>, vector<1x128xf32>
    tpu.vector_store %arg2[%c13, %c0_144], %341 {strides = array<i32>} : memref<16x128xf32, #tpu.memory_space<vmem>>, vector<1x128xf32>,
    %c7_145 = arith.constant 7 : index
    %c0_146 = arith.constant 0 : index
    %343 = vector.load %arg2[%c7_145, %c0_146] : memref<16x128xf32, #tpu.memory_space<vmem>>, vector<8x128xf32>
    %344 = vector.broadcast %24 : vector<8x1xf32> to vector<8x128xf32>
    %345 = arith.cmpf oeq, %343, %344 : vector<8x128xf32>
    %cst_147 = arith.constant 1.000000e+00 : f32
    %cst_148 = arith.constant 0.000000e+00 : f32
    %346 = vector.broadcast %cst_147 : f32 to vector<8x128xf32>
    %347 = vector.broadcast %cst_148 : f32 to vector<8x128xf32>
    %348 = arith.select %345, %346, %347 : vector<8x128xi1>, vector<8x128xf32>
    %cst_149 = arith.constant dense<0.000000e+00> : vector<128xf32>
    %349 = vector.multi_reduction <add>, %348, %cst_149 [0] : vector<8x128xf32> to vector<128xf32>
    %350 = vector.shape_cast %349 : vector<128xf32> to vector<1x128xf32>
    %cst_150 = arith.constant 8.000000e+00 : f32
    %351 = vector.broadcast %cst_150 : f32 to vector<1x128xf32>
    %352 = arith.cmpf oeq, %350, %351 : vector<1x128xf32>
    %353 = vector.broadcast %23 : vector<8x1xf32> to vector<8x128xf32>
    %354 = arith.cmpf oeq, %343, %353 : vector<8x128xf32>
    %cst_151 = arith.constant 1.000000e+00 : f32
    %cst_152 = arith.constant 0.000000e+00 : f32
    %355 = vector.broadcast %cst_151 : f32 to vector<8x128xf32>
    %356 = vector.broadcast %cst_152 : f32 to vector<8x128xf32>
    %357 = arith.select %354, %355, %356 : vector<8x128xi1>, vector<8x128xf32>
    %cst_153 = arith.constant dense<0.000000e+00> : vector<128xf32>
    %358 = vector.multi_reduction <add>, %357, %cst_153 [0] : vector<8x128xf32> to vector<128xf32>
    %359 = vector.shape_cast %358 : vector<128xf32> to vector<1x128xf32>
    %cst_154 = arith.constant 8.000000e+00 : f32
    %360 = vector.broadcast %cst_154 : f32 to vector<1x128xf32>
    %361 = arith.cmpf oeq, %359, %360 : vector<1x128xf32>
    %362 = arith.ori %352, %361 : vector<1x128xi1>
    %363 = vector.broadcast %26 : vector<8x1xf32> to vector<8x128xf32>
    %364 = arith.cmpf oeq, %343, %363 : vector<8x128xf32>
    %cst_155 = arith.constant 1.000000e+00 : f32
    %cst_156 = arith.constant 0.000000e+00 : f32
    %365 = vector.broadcast %cst_155 : f32 to vector<8x128xf32>
    %366 = vector.broadcast %cst_156 : f32 to vector<8x128xf32>
    %367 = arith.select %364, %365, %366 : vector<8x128xi1>, vector<8x128xf32>
    %cst_157 = arith.constant dense<0.000000e+00> : vector<128xf32>
    %368 = vector.multi_reduction <add>, %367, %cst_157 [0] : vector<8x128xf32> to vector<128xf32>
    %369 = vector.shape_cast %368 : vector<128xf32> to vector<1x128xf32>
    %cst_158 = arith.constant 8.000000e+00 : f32
    %370 = vector.broadcast %cst_158 : f32 to vector<1x128xf32>
    %371 = arith.cmpf oeq, %369, %370 : vector<1x128xf32>
    %372 = arith.ori %362, %371 : vector<1x128xi1>
    %373 = vector.broadcast %27 : vector<8x1xf32> to vector<8x128xf32>
    %374 = arith.cmpf oeq, %343, %373 : vector<8x128xf32>
    %cst_159 = arith.constant 1.000000e+00 : f32
    %cst_160 = arith.constant 0.000000e+00 : f32
    %375 = vector.broadcast %cst_159 : f32 to vector<8x128xf32>
    %376 = vector.broadcast %cst_160 : f32 to vector<8x128xf32>
    %377 = arith.select %374, %375, %376 : vector<8x128xi1>, vector<8x128xf32>
    %cst_161 = arith.constant dense<0.000000e+00> : vector<128xf32>
    %378 = vector.multi_reduction <add>, %377, %cst_161 [0] : vector<8x128xf32> to vector<128xf32>
    %379 = vector.shape_cast %378 : vector<128xf32> to vector<1x128xf32>
    %cst_162 = arith.constant 8.000000e+00 : f32
    %380 = vector.broadcast %cst_162 : f32 to vector<1x128xf32>
    %381 = arith.cmpf oeq, %379, %380 : vector<1x128xf32>
    %382 = arith.ori %372, %381 : vector<1x128xi1>
    %383 = vector.extract_strided_slice %343 {offsets = [7, 0], sizes = [1, 128], strides = [1, 1]} : vector<8x128xf32> to vector<1x128xf32>
    %cst_163 = arith.constant 0.000000e+00 : f32
    %384 = vector.broadcast %cst_163 : f32 to vector<1x128xf32>
    %385 = arith.subf %384, %383 : vector<1x128xf32>
    %386 = arith.select %382, %385, %383 : vector<1x128xi1>, vector<1x128xf32>
    %c14 = arith.constant 14 : index
    %c0_164 = arith.constant 0 : index
    %387 = vector.load %arg2[%c14, %c0_164] : memref<16x128xf32, #tpu.memory_space<vmem>>, vector<1x128xf32>
    tpu.vector_store %arg2[%c14, %c0_164], %386 {strides = array<i32>} : memref<16x128xf32, #tpu.memory_space<vmem>>, vector<1x128xf32>,
    %c8_165 = arith.constant 8 : index
    %c0_166 = arith.constant 0 : index
    %388 = vector.load %arg2[%c8_165, %c0_166] : memref<16x128xf32, #tpu.memory_space<vmem>>, vector<8x128xf32>
    %389 = vector.broadcast %24 : vector<8x1xf32> to vector<8x128xf32>
    %390 = arith.cmpf oeq, %388, %389 : vector<8x128xf32>
    %cst_167 = arith.constant 1.000000e+00 : f32
    %cst_168 = arith.constant 0.000000e+00 : f32
    %391 = vector.broadcast %cst_167 : f32 to vector<8x128xf32>
    %392 = vector.broadcast %cst_168 : f32 to vector<8x128xf32>
    %393 = arith.select %390, %391, %392 : vector<8x128xi1>, vector<8x128xf32>
    %cst_169 = arith.constant dense<0.000000e+00> : vector<128xf32>
    %394 = vector.multi_reduction <add>, %393, %cst_169 [0] : vector<8x128xf32> to vector<128xf32>
    %395 = vector.shape_cast %394 : vector<128xf32> to vector<1x128xf32>
    %cst_170 = arith.constant 8.000000e+00 : f32
    %396 = vector.broadcast %cst_170 : f32 to vector<1x128xf32>
    %397 = arith.cmpf oeq, %395, %396 : vector<1x128xf32>
    %398 = vector.broadcast %23 : vector<8x1xf32> to vector<8x128xf32>
    %399 = arith.cmpf oeq, %388, %398 : vector<8x128xf32>
    %cst_171 = arith.constant 1.000000e+00 : f32
    %cst_172 = arith.constant 0.000000e+00 : f32
    %400 = vector.broadcast %cst_171 : f32 to vector<8x128xf32>
    %401 = vector.broadcast %cst_172 : f32 to vector<8x128xf32>
    %402 = arith.select %399, %400, %401 : vector<8x128xi1>, vector<8x128xf32>
    %cst_173 = arith.constant dense<0.000000e+00> : vector<128xf32>
    %403 = vector.multi_reduction <add>, %402, %cst_173 [0] : vector<8x128xf32> to vector<128xf32>
    %404 = vector.shape_cast %403 : vector<128xf32> to vector<1x128xf32>
    %cst_174 = arith.constant 8.000000e+00 : f32
    %405 = vector.broadcast %cst_174 : f32 to vector<1x128xf32>
    %406 = arith.cmpf oeq, %404, %405 : vector<1x128xf32>
    %407 = arith.ori %397, %406 : vector<1x128xi1>
    %408 = vector.broadcast %26 : vector<8x1xf32> to vector<8x128xf32>
    %409 = arith.cmpf oeq, %388, %408 : vector<8x128xf32>
    %cst_175 = arith.constant 1.000000e+00 : f32
    %cst_176 = arith.constant 0.000000e+00 : f32
    %410 = vector.broadcast %cst_175 : f32 to vector<8x128xf32>
    %411 = vector.broadcast %cst_176 : f32 to vector<8x128xf32>
    %412 = arith.select %409, %410, %411 : vector<8x128xi1>, vector<8x128xf32>
    %cst_177 = arith.constant dense<0.000000e+00> : vector<128xf32>
    %413 = vector.multi_reduction <add>, %412, %cst_177 [0] : vector<8x128xf32> to vector<128xf32>
    %414 = vector.shape_cast %413 : vector<128xf32> to vector<1x128xf32>
    %cst_178 = arith.constant 8.000000e+00 : f32
    %415 = vector.broadcast %cst_178 : f32 to vector<1x128xf32>
    %416 = arith.cmpf oeq, %414, %415 : vector<1x128xf32>
    %417 = arith.ori %407, %416 : vector<1x128xi1>
    %418 = vector.broadcast %27 : vector<8x1xf32> to vector<8x128xf32>
    %419 = arith.cmpf oeq, %388, %418 : vector<8x128xf32>
    %cst_179 = arith.constant 1.000000e+00 : f32
    %cst_180 = arith.constant 0.000000e+00 : f32
    %420 = vector.broadcast %cst_179 : f32 to vector<8x128xf32>
    %421 = vector.broadcast %cst_180 : f32 to vector<8x128xf32>
    %422 = arith.select %419, %420, %421 : vector<8x128xi1>, vector<8x128xf32>
    %cst_181 = arith.constant dense<0.000000e+00> : vector<128xf32>
    %423 = vector.multi_reduction <add>, %422, %cst_181 [0] : vector<8x128xf32> to vector<128xf32>
    %424 = vector.shape_cast %423 : vector<128xf32> to vector<1x128xf32>
    %cst_182 = arith.constant 8.000000e+00 : f32
    %425 = vector.broadcast %cst_182 : f32 to vector<1x128xf32>
    %426 = arith.cmpf oeq, %424, %425 : vector<1x128xf32>
    %427 = arith.ori %417, %426 : vector<1x128xi1>
    %428 = vector.extract_strided_slice %388 {offsets = [7, 0], sizes = [1, 128], strides = [1, 1]} : vector<8x128xf32> to vector<1x128xf32>
    %cst_183 = arith.constant 0.000000e+00 : f32
    %429 = vector.broadcast %cst_183 : f32 to vector<1x128xf32>
    %430 = arith.subf %429, %428 : vector<1x128xf32>
    %431 = arith.select %427, %430, %428 : vector<1x128xi1>, vector<1x128xf32>
    %c15 = arith.constant 15 : index
    %c0_184 = arith.constant 0 : index
    %432 = vector.load %arg2[%c15, %c0_184] : memref<16x128xf32, #tpu.memory_space<vmem>>, vector<1x128xf32>
    tpu.vector_store %arg2[%c15, %c0_184], %431 {strides = array<i32>} : memref<16x128xf32, #tpu.memory_space<vmem>>, vector<1x128xf32>,
    %c0_185 = arith.constant 0 : index
    %c0_186 = arith.constant 0 : index
    %433 = vector.load %arg2[%c0_185, %c0_186] : memref<16x128xf32, #tpu.memory_space<vmem>>, vector<16x128xf32>
    %cst_187 = arith.constant 0.000000e+00 : f32
    %434 = vector.broadcast %cst_187 : f32 to vector<16x128xf32>
    %435 = arith.maximumf %433, %434 : vector<16x128xf32>
    %c0_188 = arith.constant 0 : index
    %c0_189 = arith.constant 0 : index
    %436 = vector.load %arg2[%c0_188, %c0_189] : memref<16x128xf32, #tpu.memory_space<vmem>>, vector<16x128xf32>
    tpu.vector_store %arg2[%c0_188, %c0_189], %435 {strides = array<i32>} : memref<16x128xf32, #tpu.memory_space<vmem>>, vector<16x128xf32>,
    return
  }
  func.func @transform_0(%arg0: i32) -> (i32, i32) {
    %c0_i32 = arith.constant 0 : i32
    %c0_i32_0 = arith.constant 0 : i32
    return %c0_i32, %arg0 : i32, i32
  }
  func.func @transform_1(%arg0: i32) -> (i32, i32) {
    %c0_i32 = arith.constant 0 : i32
    %c0_i32_0 = arith.constant 0 : i32
    return %c0_i32, %arg0 : i32, i32
  }
}

</mosaic_0001>

<llo_original>
// kernel: tpu_custom_call.1
$region0: #{tpu_custom_call.1}
  #allocation0 [shape = 'u32[]', space=smem, size = 0x4, offset = 0x4, fixed_abs, tag = 'smem constant byte address 0x4 - core index']
  #allocation1 [shape = 'u32[144,128]{1,0:T(1,128)}', space=vmem, size = 0x12000, scoped, tag = 'internal scratch']
  %s0 = inlined_call_operand.hbm [shape: f32[16,128], index: 0, kind: input, shape index: {}]
  %s1 = inlined_call_operand.hbm [shape: f32[16,128], index: 1, kind: output, shape index: {}]
  %s2 = sld [smem:[#allocation0]]
  $region18: #{tpu_custom_call.1} parent=0
    _
  %s4 = ssub.s32 1, %s2
  %s5 = scalar_select 0, %s4, %s2
  $region1: #{tpu_custom_call.1} parent=0
    #allocation2 [shape = 'u8[8192]{0}', space=vmem, size = 0x2000, scoped, tag = 'input window, operand 0, single buffered']
    #allocation3 [shape = 's32[1]{0}', space=sflag, size = 0x4, scoped, tag = 'scoped memory for tpu_custom_call.1']
    #allocation4 [shape = 's32[1]{0}', space=sflag, size = 0x4, scoped, tag = 'scoped memory for tpu_custom_call.1']
    #allocation5 [shape = 'u8[8192]{0}', space=vmem, size = 0x2000, scoped, tag = 'output window, operand 0, single buffered']
    %6 = vsyncpa [#allocation3], 0
    %7 = vsyncpa [#allocation4], 0
    // Predicated region
    $region2: #{tpu_custom_call.1} parent=1 // pred_check
      _
    $region3: #{tpu_custom_call.1} parent=1 // pred_check_branch
      %9 = sbr.rel (0) target = $region5
    $region4: #{tpu_custom_call.1} parent=1 // pred_region
      %s11 = ssub.s32 256, 256
      %12 = vsyncadd [#allocation3], %s11
      %s13 = sshll.u32 [#allocation2], 4
      %s14 = int_to_ptr.vmem [resolvable:$true] %s13
      %19 = dma.hbm_to_vmem [thread:$0]  %s0, 256, %s14, [#allocation3], 128, 128, 8
    $region5: #{tpu_custom_call.1} parent=1 // pred_fallthru
      _
    // Predicated region
    $region6: #{tpu_custom_call.1} parent=1 // pred_check
      _
    $region7: #{tpu_custom_call.1} parent=1 // pred_check_branch
      %21 = sbr.rel (0) target = $region9
    $region8: #{tpu_custom_call.1} parent=1 // pred_region
      %22 = dma.done [#allocation3], 256
    $region9: #{tpu_custom_call.1} parent=1 // pred_fallthru
      _
    %v23 = vld [vmem:[#allocation2] sm:$0xff]
    %v24 = vld [vmem:[#allocation2 + $0x8] sm:$0xff]
    %25 = vst [vmem:[#allocation5] sm:$0xff] %v23
    %26 = vst [vmem:[#allocation5 + $0x8] sm:$0xff] %v24
    %v27 = vlaneseq
    %v28 = vshrl.u32 %v27, 7
    %vm29 = vcmp.lt.s32.totalorder %v28, 0
    %v30 = vsub.s32 0, %v28
    %v31 = vsel %vm29, %v30, %v28
    %v32 = vshrl.u32 %v31, 1
    %v33 = vand.u32 %v31, 1
    %v34 = vsub.s32 0, %v33
    %v35 = vsel %vm29, %v34, %v33
    %vm36 = vcmp.ne.s32.totalorder %v35, 0
    %vm37 = vcmp.lt.s32.totalorder %v35, 0
    %vm38 = vmand %vm37, %vm36
    %v39 = vadd.s32 %v35, 2
    %v40 = vsel %vm38, %v39, %v35
    %vm41 = vcmp.eq.s32.totalorder %v40, 0
    %v42 = vsel %vm41, -1.0, 1.0
    %v43 = vsub.f32 0.0, %v42
    %v44 = vld [vmem:[#allocation5] sm:$0xff]
    %vm45 = vcmp.eq.f32.partialorder %v44, -1.0
    %v46 = vsel %vm45, 1.0, 0.0
    %v47 = vrot.slane %v46, 4
    %v48 = vadd.f32 %v46, %v47
    %v49 = vrot.slane %v48, 2
    %v50 = vadd.f32 %v48, %v49
    %v51 = vrot.slane %v50, 1
    %v52 = vadd.f32 %v50, %v51
    %vm53 = vcmp.eq.f32.partialorder %v52, 8.0
    %vm54 = vcmp.eq.f32.partialorder %v44, %v42
    %v55 = vsel %vm54, 1.0, 0.0
    %v56 = vrot.slane %v55, 4
    %v57 = vadd.f32 %v55, %v56
    %v58 = vrot.slane %v57, 2
    %v59 = vadd.f32 %v57, %v58
    %v60 = vrot.slane %v59, 1
    %v61 = vadd.f32 %v59, %v60
    %vm62 = vcmp.eq.f32.partialorder %v61, 8.0
    %vm63 = vmor %vm53, %vm62
    %vm64 = vcmp.eq.f32.partialorder %v44, %v43
    %v65 = vsel %vm64, 1.0, 0.0
    %v66 = vrot.slane %v65, 4
    %v67 = vadd.f32 %v65, %v66
    %v68 = vrot.slane %v67, 2
    %v69 = vadd.f32 %v67, %v68
    %v70 = vrot.slane %v69, 1
    %v71 = vadd.f32 %v69, %v70
    %vm72 = vcmp.eq.f32.partialorder %v71, 8.0
    %vm73 = vmor %vm63, %vm72
    %vm74 = vcmp.eq.f32.partialorder %v44, 1.0
    %v75 = vsel %vm74, 1.0, 0.0
    %v76 = vrot.slane %v75, 4
    %v77 = vadd.f32 %v75, %v76
    %v78 = vrot.slane %v77, 2
    %v79 = vadd.f32 %v77, %v78
    %v80 = vrot.slane %v79, 1
    %v81 = vadd.f32 %v79, %v80
    %vm82 = vcmp.eq.f32.partialorder %v81, 8.0
    %vm83 = vmor %vm73, %vm82
    %v84 = vsub.f32 0.0, %v44
    %v85 = vsel %vm83, %v84, %v44
    %86 = vst [vmem:[#allocation5] sm:$0x80] %v85
    %v87 = vld [vmem:[#allocation5 + $0x1] sm:$0xff]
    %vm88 = vcmp.eq.f32.partialorder %v87, -1.0
    %v89 = vsel %vm88, 1.0, 0.0
    %v90 = vrot.slane %v89, 4
    %v91 = vadd.f32 %v89, %v90
    %v92 = vrot.slane %v91, 2
    %v93 = vadd.f32 %v91, %v92
    %v94 = vrot.slane %v93, 1
    %v95 = vadd.f32 %v93, %v94
    %vm96 = vcmp.eq.f32.partialorder %v95, 8.0
    %vm97 = vcmp.eq.f32.partialorder %v87, %v42
    %v98 = vsel %vm97, 1.0, 0.0
    %v99 = vrot.slane %v98, 4
    %v100 = vadd.f32 %v98, %v99
    %v101 = vrot.slane %v100, 2
    %v102 = vadd.f32 %v100, %v101
    %v103 = vrot.slane %v102, 1
    %v104 = vadd.f32 %v102, %v103
    %vm105 = vcmp.eq.f32.partialorder %v104, 8.0
    %vm106 = vmor %vm96, %vm105
    %vm107 = vcmp.eq.f32.partialorder %v87, %v43
    %v108 = vsel %vm107, 1.0, 0.0
    %v109 = vrot.slane %v108, 4
    %v110 = vadd.f32 %v108, %v109
    %v111 = vrot.slane %v110, 2
    %v112 = vadd.f32 %v110, %v111
    %v113 = vrot.slane %v112, 1
    %v114 = vadd.f32 %v112, %v113
    %vm115 = vcmp.eq.f32.partialorder %v114, 8.0
    %vm116 = vmor %vm106, %vm115
    %vm117 = vcmp.eq.f32.partialorder %v87, 1.0
    %v118 = vsel %vm117, 1.0, 0.0
    %v119 = vrot.slane %v118, 4
    %v120 = vadd.f32 %v118, %v119
    %v121 = vrot.slane %v120, 2
    %v122 = vadd.f32 %v120, %v121
    %v123 = vrot.slane %v122, 1
    %v124 = vadd.f32 %v122, %v123
    %vm125 = vcmp.eq.f32.partialorder %v124, 8.0
    %vm126 = vmor %vm116, %vm125
    %v127 = vsub.f32 0.0, %v87
    %v128 = vsel %vm126, %v127, %v87
    %129 = vst [vmem:[#allocation5 + $0x1] sm:$0x80] %v128
    %v130 = vld [vmem:[#allocation5 + $0x2] sm:$0xff]
    %vm131 = vcmp.eq.f32.partialorder %v130, -1.0
    %v132 = vsel %vm131, 1.0, 0.0
    %v133 = vrot.slane %v132, 4
    %v134 = vadd.f32 %v132, %v133
    %v135 = vrot.slane %v134, 2
    %v136 = vadd.f32 %v134, %v135
    %v137 = vrot.slane %v136, 1
    %v138 = vadd.f32 %v136, %v137
    %vm139 = vcmp.eq.f32.partialorder %v138, 8.0
    %vm140 = vcmp.eq.f32.partialorder %v130, %v42
    %v141 = vsel %vm140, 1.0, 0.0
    %v142 = vrot.slane %v141, 4
    %v143 = vadd.f32 %v141, %v142
    %v144 = vrot.slane %v143, 2
    %v145 = vadd.f32 %v143, %v144
    %v146 = vrot.slane %v145, 1
    %v147 = vadd.f32 %v145, %v146
    %vm148 = vcmp.eq.f32.partialorder %v147, 8.0
    %vm149 = vmor %vm139, %vm148
    %vm150 = vcmp.eq.f32.partialorder %v130, %v43
    %v151 = vsel %vm150, 1.0, 0.0
    %v152 = vrot.slane %v151, 4
    %v153 = vadd.f32 %v151, %v152
    %v154 = vrot.slane %v153, 2
    %v155 = vadd.f32 %v153, %v154
    %v156 = vrot.slane %v155, 1
    %v157 = vadd.f32 %v155, %v156
    %vm158 = vcmp.eq.f32.partialorder %v157, 8.0
    %vm159 = vmor %vm149, %vm158
    %vm160 = vcmp.eq.f32.partialorder %v130, 1.0
    %v161 = vsel %vm160, 1.0, 0.0
    %v162 = vrot.slane %v161, 4
    %v163 = vadd.f32 %v161, %v162
    %v164 = vrot.slane %v163, 2
    %v165 = vadd.f32 %v163, %v164
    %v166 = vrot.slane %v165, 1
    %v167 = vadd.f32 %v165, %v166
    %vm168 = vcmp.eq.f32.partialorder %v167, 8.0
    %vm169 = vmor %vm159, %vm168
    %v170 = vsub.f32 0.0, %v130
    %v171 = vsel %vm169, %v170, %v130
    %172 = vst [vmem:[#allocation5 + $0x2] sm:$0x80] %v171
    %v173 = vld [vmem:[#allocation5 + $0x3] sm:$0xff]
    %vm174 = vcmp.eq.f32.partialorder %v173, -1.0
    %v175 = vsel %vm174, 1.0, 0.0
    %v176 = vrot.slane %v175, 4
    %v177 = vadd.f32 %v175, %v176
    %v178 = vrot.slane %v177, 2
    %v179 = vadd.f32 %v177, %v178
    %v180 = vrot.slane %v179, 1
    %v181 = vadd.f32 %v179, %v180
    %vm182 = vcmp.eq.f32.partialorder %v181, 8.0
    %vm183 = vcmp.eq.f32.partialorder %v173, %v42
    %v184 = vsel %vm183, 1.0, 0.0
    %v185 = vrot.slane %v184, 4
    %v186 = vadd.f32 %v184, %v185
    %v187 = vrot.slane %v186, 2
    %v188 = vadd.f32 %v186, %v187
    %v189 = vrot.slane %v188, 1
    %v190 = vadd.f32 %v188, %v189
    %vm191 = vcmp.eq.f32.partialorder %v190, 8.0
    %vm192 = vmor %vm182, %vm191
    %vm193 = vcmp.eq.f32.partialorder %v173, %v43
    %v194 = vsel %vm193, 1.0, 0.0
    %v195 = vrot.slane %v194, 4
    %v196 = vadd.f32 %v194, %v195
    %v197 = vrot.slane %v196, 2
    %v198 = vadd.f32 %v196, %v197
    %v199 = vrot.slane %v198, 1
    %v200 = vadd.f32 %v198, %v199
    %vm201 = vcmp.eq.f32.partialorder %v200, 8.0
    %vm202 = vmor %vm192, %vm201
    %vm203 = vcmp.eq.f32.partialorder %v173, 1.0
    %v204 = vsel %vm203, 1.0, 0.0
    %v205 = vrot.slane %v204, 4
    %v206 = vadd.f32 %v204, %v205
    %v207 = vrot.slane %v206, 2
    %v208 = vadd.f32 %v206, %v207
    %v209 = vrot.slane %v208, 1
    %v210 = vadd.f32 %v208, %v209
    %vm211 = vcmp.eq.f32.partialorder %v210, 8.0
    %vm212 = vmor %vm202, %vm211
    %v213 = vsub.f32 0.0, %v173
    %v214 = vsel %vm212, %v213, %v173
    %215 = vst [vmem:[#allocation5 + $0x3] sm:$0x80] %v214
    %v216 = vld [vmem:[#allocation5 + $0x4] sm:$0xff]
    %vm217 = vcmp.eq.f32.partialorder %v216, -1.0
    %v218 = vsel %vm217, 1.0, 0.0
    %v219 = vrot.slane %v218, 4
    %v220 = vadd.f32 %v218, %v219
    %v221 = vrot.slane %v220, 2
    %v222 = vadd.f32 %v220, %v221
    %v223 = vrot.slane %v222, 1
    %v224 = vadd.f32 %v222, %v223
    %vm225 = vcmp.eq.f32.partialorder %v224, 8.0
    %vm226 = vcmp.eq.f32.partialorder %v216, %v42
    %v227 = vsel %vm226, 1.0, 0.0
    %v228 = vrot.slane %v227, 4
    %v229 = vadd.f32 %v227, %v228
    %v230 = vrot.slane %v229, 2
    %v231 = vadd.f32 %v229, %v230
    %v232 = vrot.slane %v231, 1
    %v233 = vadd.f32 %v231, %v232
    %vm234 = vcmp.eq.f32.partialorder %v233, 8.0
    %vm235 = vmor %vm225, %vm234
    %vm236 = vcmp.eq.f32.partialorder %v216, %v43
    %v237 = vsel %vm236, 1.0, 0.0
    %v238 = vrot.slane %v237, 4
    %v239 = vadd.f32 %v237, %v238
    %v240 = vrot.slane %v239, 2
    %v241 = vadd.f32 %v239, %v240
    %v242 = vrot.slane %v241, 1
    %v243 = vadd.f32 %v241, %v242
    %vm244 = vcmp.eq.f32.partialorder %v243, 8.0
    %vm245 = vmor %vm235, %vm244
    %vm246 = vcmp.eq.f32.partialorder %v216, 1.0
    %v247 = vsel %vm246, 1.0, 0.0
    %v248 = vrot.slane %v247, 4
    %v249 = vadd.f32 %v247, %v248
    %v250 = vrot.slane %v249, 2
    %v251 = vadd.f32 %v249, %v250
    %v252 = vrot.slane %v251, 1
    %v253 = vadd.f32 %v251, %v252
    %vm254 = vcmp.eq.f32.partialorder %v253, 8.0
    %vm255 = vmor %vm245, %vm254
    %v256 = vsub.f32 0.0, %v216
    %v257 = vsel %vm255, %v256, %v216
    %258 = vst [vmem:[#allocation5 + $0x4] sm:$0x80] %v257
    %v259 = vld [vmem:[#allocation5 + $0x5] sm:$0xff]
    %vm260 = vcmp.eq.f32.partialorder %v259, -1.0
    %v261 = vsel %vm260, 1.0, 0.0
    %v262 = vrot.slane %v261, 4
    %v263 = vadd.f32 %v261, %v262
    %v264 = vrot.slane %v263, 2
    %v265 = vadd.f32 %v263, %v264
    %v266 = vrot.slane %v265, 1
    %v267 = vadd.f32 %v265, %v266
    %vm268 = vcmp.eq.f32.partialorder %v267, 8.0
    %vm269 = vcmp.eq.f32.partialorder %v259, %v42
    %v270 = vsel %vm269, 1.0, 0.0
    %v271 = vrot.slane %v270, 4
    %v272 = vadd.f32 %v270, %v271
    %v273 = vrot.slane %v272, 2
    %v274 = vadd.f32 %v272, %v273
    %v275 = vrot.slane %v274, 1
    %v276 = vadd.f32 %v274, %v275
    %vm277 = vcmp.eq.f32.partialorder %v276, 8.0
    %vm278 = vmor %vm268, %vm277
    %vm279 = vcmp.eq.f32.partialorder %v259, %v43
    %v280 = vsel %vm279, 1.0, 0.0
    %v281 = vrot.slane %v280, 4
    %v282 = vadd.f32 %v280, %v281
    %v283 = vrot.slane %v282, 2
    %v284 = vadd.f32 %v282, %v283
    %v285 = vrot.slane %v284, 1
    %v286 = vadd.f32 %v284, %v285
    %vm287 = vcmp.eq.f32.partialorder %v286, 8.0
    %vm288 = vmor %vm278, %vm287
    %vm289 = vcmp.eq.f32.partialorder %v259, 1.0
    %v290 = vsel %vm289, 1.0, 0.0
    %v291 = vrot.slane %v290, 4
    %v292 = vadd.f32 %v290, %v291
    %v293 = vrot.slane %v292, 2
    %v294 = vadd.f32 %v292, %v293
    %v295 = vrot.slane %v294, 1
    %v296 = vadd.f32 %v294, %v295
    %vm297 = vcmp.eq.f32.partialorder %v296, 8.0
    %vm298 = vmor %vm288, %vm297
    %v299 = vsub.f32 0.0, %v259
    %v300 = vsel %vm298, %v299, %v259
    %301 = vst [vmem:[#allocation5 + $0x5] sm:$0x80] %v300
    %v302 = vld [vmem:[#allocation5 + $0x6] sm:$0xff]
    %vm303 = vcmp.eq.f32.partialorder %v302, -1.0
    %v304 = vsel %vm303, 1.0, 0.0
    %v305 = vrot.slane %v304, 4
    %v306 = vadd.f32 %v304, %v305
    %v307 = vrot.slane %v306, 2
    %v308 = vadd.f32 %v306, %v307
    %v309 = vrot.slane %v308, 1
    %v310 = vadd.f32 %v308, %v309
    %vm311 = vcmp.eq.f32.partialorder %v310, 8.0
    %vm312 = vcmp.eq.f32.partialorder %v302, %v42
    %v313 = vsel %vm312, 1.0, 0.0
    %v314 = vrot.slane %v313, 4
    %v315 = vadd.f32 %v313, %v314
    %v316 = vrot.slane %v315, 2
    %v317 = vadd.f32 %v315, %v316
    %v318 = vrot.slane %v317, 1
    %v319 = vadd.f32 %v317, %v318
    %vm320 = vcmp.eq.f32.partialorder %v319, 8.0
    %vm321 = vmor %vm311, %vm320
    %vm322 = vcmp.eq.f32.partialorder %v302, %v43
    %v323 = vsel %vm322, 1.0, 0.0
    %v324 = vrot.slane %v323, 4
    %v325 = vadd.f32 %v323, %v324
    %v326 = vrot.slane %v325, 2
    %v327 = vadd.f32 %v325, %v326
    %v328 = vrot.slane %v327, 1
    %v329 = vadd.f32 %v327, %v328
    %vm330 = vcmp.eq.f32.partialorder %v329, 8.0
    %vm331 = vmor %vm321, %vm330
    %vm332 = vcmp.eq.f32.partialorder %v302, 1.0
    %v333 = vsel %vm332, 1.0, 0.0
    %v334 = vrot.slane %v333, 4
    %v335 = vadd.f32 %v333, %v334
    %v336 = vrot.slane %v335, 2
    %v337 = vadd.f32 %v335, %v336
    %v338 = vrot.slane %v337, 1
    %v339 = vadd.f32 %v337, %v338
    %vm340 = vcmp.eq.f32.partialorder %v339, 8.0
    %vm341 = vmor %vm331, %vm340
    %v342 = vsub.f32 0.0, %v302
    %v343 = vsel %vm341, %v342, %v302
    %344 = vst [vmem:[#allocation5 + $0x6] sm:$0x80] %v343
    %v345 = vld [vmem:[#allocation5 + $0x7] sm:$0xff]
    %vm346 = vcmp.eq.f32.partialorder %v345, -1.0
    %v347 = vsel %vm346, 1.0, 0.0
    %v348 = vrot.slane %v347, 4
    %v349 = vadd.f32 %v347, %v348
    %v350 = vrot.slane %v349, 2
    %v351 = vadd.f32 %v349, %v350
    %v352 = vrot.slane %v351, 1
    %v353 = vadd.f32 %v351, %v352
    %vm354 = vcmp.eq.f32.partialorder %v353, 8.0
    %vm355 = vcmp.eq.f32.partialorder %v345, %v42
    %v356 = vsel %vm355, 1.0, 0.0
    %v357 = vrot.slane %v356, 4
    %v358 = vadd.f32 %v356, %v357
    %v359 = vrot.slane %v358, 2
    %v360 = vadd.f32 %v358, %v359
    %v361 = vrot.slane %v360, 1
    %v362 = vadd.f32 %v360, %v361
    %vm363 = vcmp.eq.f32.partialorder %v362, 8.0
    %vm364 = vmor %vm354, %vm363
    %vm365 = vcmp.eq.f32.partialorder %v345, %v43
    %v366 = vsel %vm365, 1.0, 0.0
    %v367 = vrot.slane %v366, 4
    %v368 = vadd.f32 %v366, %v367
    %v369 = vrot.slane %v368, 2
    %v370 = vadd.f32 %v368, %v369
    %v371 = vrot.slane %v370, 1
    %v372 = vadd.f32 %v370, %v371
    %vm373 = vcmp.eq.f32.partialorder %v372, 8.0
    %vm374 = vmor %vm364, %vm373
    %vm375 = vcmp.eq.f32.partialorder %v345, 1.0
    %v376 = vsel %vm375, 1.0, 0.0
    %v377 = vrot.slane %v376, 4
    %v378 = vadd.f32 %v376, %v377
    %v379 = vrot.slane %v378, 2
    %v380 = vadd.f32 %v378, %v379
    %v381 = vrot.slane %v380, 1
    %v382 = vadd.f32 %v380, %v381
    %vm383 = vcmp.eq.f32.partialorder %v382, 8.0
    %vm384 = vmor %vm374, %vm383
    %v385 = vsub.f32 0.0, %v345
    %v386 = vsel %vm384, %v385, %v345
    %387 = vst [vmem:[#allocation5 + $0x7] sm:$0x80] %v386
    %v388 = vld [vmem:[#allocation5 + $0x8] sm:$0xff]
    %vm389 = vcmp.eq.f32.partialorder %v388, -1.0
    %v390 = vsel %vm389, 1.0, 0.0
    %v391 = vrot.slane %v390, 4
    %v392 = vadd.f32 %v390, %v391
    %v393 = vrot.slane %v392, 2
    %v394 = vadd.f32 %v392, %v393
    %v395 = vrot.slane %v394, 1
    %v396 = vadd.f32 %v394, %v395
    %vm397 = vcmp.eq.f32.partialorder %v396, 8.0
    %vm398 = vcmp.eq.f32.partialorder %v388, %v42
    %v399 = vsel %vm398, 1.0, 0.0
    %v400 = vrot.slane %v399, 4
    %v401 = vadd.f32 %v399, %v400
    %v402 = vrot.slane %v401, 2
    %v403 = vadd.f32 %v401, %v402
    %v404 = vrot.slane %v403, 1
    %v405 = vadd.f32 %v403, %v404
    %vm406 = vcmp.eq.f32.partialorder %v405, 8.0
    %vm407 = vmor %vm397, %vm406
    %vm408 = vcmp.eq.f32.partialorder %v388, %v43
    %v409 = vsel %vm408, 1.0, 0.0
    %v410 = vrot.slane %v409, 4
    %v411 = vadd.f32 %v409, %v410
    %v412 = vrot.slane %v411, 2
    %v413 = vadd.f32 %v411, %v412
    %v414 = vrot.slane %v413, 1
    %v415 = vadd.f32 %v413, %v414
    %vm416 = vcmp.eq.f32.partialorder %v415, 8.0
    %vm417 = vmor %vm407, %vm416
    %vm418 = vcmp.eq.f32.partialorder %v388, 1.0
    %v419 = vsel %vm418, 1.0, 0.0
    %v420 = vrot.slane %v419, 4
    %v421 = vadd.f32 %v419, %v420
    %v422 = vrot.slane %v421, 2
    %v423 = vadd.f32 %v421, %v422
    %v424 = vrot.slane %v423, 1
    %v425 = vadd.f32 %v423, %v424
    %vm426 = vcmp.eq.f32.partialorder %v425, 8.0
    %vm427 = vmor %vm417, %vm426
    %v428 = vsub.f32 0.0, %v388
    %v429 = vsel %vm427, %v428, %v388
    %430 = vst [vmem:[#allocation5 + $0x8] sm:$0x80] %v429
    %v431 = vld [vmem:[#allocation5] sm:$0xff]
    %v432 = vld [vmem:[#allocation5 + $0x8] sm:$0xff]
    %v433 = vmax.f32 %v431, 0.0
    %v434 = vmax.f32 %v432, 0.0
    %435 = vst [vmem:[#allocation5] sm:$0xff] %v433
    %436 = vst [vmem:[#allocation5 + $0x8] sm:$0xff] %v434
    // Predicated region
    $region10: #{tpu_custom_call.1} parent=1 // pred_check
      _
    $region11: #{tpu_custom_call.1} parent=1 // pred_check_branch
      %438 = sbr.rel (0) target = $region13
    $region12: #{tpu_custom_call.1} parent=1 // pred_region
      %s440 = ssub.s32 256, 256
      %441 = vsyncadd [#allocation4], %s440
      %s442 = sshll.u32 [#allocation5], 4
      %s443 = int_to_ptr.vmem [resolvable:$true] %s442
      %448 = dma.vmem_to_hbm [thread:$0]  %s443, 256, %s1, [#allocation4], 128, 128, 8
    $region13: #{tpu_custom_call.1} parent=1 // pred_fallthru
      _
    // Predicated region
    $region14: #{tpu_custom_call.1} parent=1 // pred_check
      _
    $region15: #{tpu_custom_call.1} parent=1 // pred_check_branch
      %450 = sbr.rel (0) target = $region17
    $region16: #{tpu_custom_call.1} parent=1 // pred_region
      %451 = dma.done [#allocation4], 256
    $region17: #{tpu_custom_call.1} parent=1 // pred_fallthru
      _
    %452 = vsyncpa [#allocation3], 1
    %453 = vsyncpa [#allocation4], 1

</llo_original>
